<compile_context>
chip_gen: v5e
topology: v5e:2x2
jax: 0.10.0
libtpu: 0.0.40
codegen_flags: <defaults>
</compile_context>

<pallas_src>
import jax
import jax.numpy as jnp
from jax.experimental import pallas as pl
from jax.experimental.pallas import tpu as pltpu

T_PAD = 128      # lane-dense output width (dim_target padded to full lanes)
G_PAD_MIN = 8    # sublane-dense output rows (graphs padded up to 8)


# ----------------------------- fused Pallas kernel --------------------------

def gin_forward(x_pad, a_hat, p_pad, w_mlp, b_mlp, w_out, out_init,
                *, num_graphs, dim_target):
    """Fused GIN forward; returns out [num_graphs, dim_target].

    x_pad   : [N, H]        f32 node features, feature dim zero-padded to H
    a_hat   : [N, N]        f32 dense A + (1+eps)I (conv aggregation)
    p_pad   : [G_PAD, N]    f32 sum-pooling matrix, rows >= G are zero
    w_mlp   : [2*(L+1),H,H] f32 folded MLP weights (first_h + each conv nn)
    b_mlp   : [2*(L+1),1,H] f32 folded MLP biases
    w_out   : [L+1, H, 128] f32 readout Linears, lanes zero-padded to 128
    out_init: [G_PAD, 128]  f32 precomputed readout-bias constants
    """
    num_layers = w_out.shape[0]
    num_conv = num_layers - 1
    g_pad, t_pad = out_init.shape

    def kernel(x_ref, a_ref, p_ref, wm_ref, bm_ref, wo_ref, oi_ref, o_ref):
        def mlp(v, layer):
            # Linear(+folded BN) -> ReLU -> Linear(+folded BN) -> ReLU
            v = jnp.dot(v, wm_ref[2 * layer],
                        preferred_element_type=jnp.float32) + bm_ref[2 * layer]
            v = jnp.maximum(v, 0.0)
            v = jnp.dot(v, wm_ref[2 * layer + 1],
                        preferred_element_type=jnp.float32) + bm_ref[2 * layer + 1]
            return jnp.maximum(v, 0.0)

        p_mat = p_ref[...]                 # [G_PAD, N] (padded rows are zero)
        out = oi_ref[...]                  # [G_PAD, 128] all readout-bias constants

        # ---- layer 0: first_h(x); identity aggregation skipped entirely ----
        h = mlp(x_ref[...], 0)                                         # [N, H]
        pooled = jnp.dot(p_mat, h, preferred_element_type=jnp.float32)  # [G_PAD, H]
        out = out + jnp.dot(pooled, wo_ref[0],
                            preferred_element_type=jnp.float32)         # [G_PAD, 128]

        # ---- conv layers: h = nn(A_hat @ h); out += readout(pool(h)) ----
        # Static unroll (L=2). For many layers use lax.fori_loop with dynamic
        # wm_ref[l] indexing to bound vreg live ranges.
        for l in range(num_conv):
            # A_hat read per-iteration; never hoist it into one resident value
            # (at large N that would spill — the tiled variant streams A tiles).
            agg = jnp.dot(a_ref[...], h,
                          preferred_element_type=jnp.float32)           # [N, H]
            h = mlp(agg, l + 1)
            pooled = jnp.dot(p_mat, h, preferred_element_type=jnp.float32)
            out = out + jnp.dot(pooled, wo_ref[l + 1],
                                preferred_element_type=jnp.float32)

        o_ref[...] = out                   # full [G_PAD, 128] store: lane-dense

    vmem = pl.BlockSpec(memory_space=pltpu.MemorySpace.VMEM)
    out_pad = pl.pallas_call(
        kernel,
        out_shape=jax.ShapeDtypeStruct((g_pad, t_pad), jnp.float32),
        in_specs=[vmem] * 7,
        out_specs=vmem,
    )(x_pad, a_hat, p_pad, w_mlp, b_mlp, w_out, out_init)
    return out_pad[:num_graphs, :dim_target]


# ------------------------------ main / glue --------------------------------

if __name__ == "__main__":
    # config: layers=2 -> no_layers = 3; dim_embedding=32; aggregation='sum';
    # train_eps=True (eps initialized to 0); dropout=0.0 (deterministic).
    N_PER_G, G = 8, 3
    N = N_PER_G * G
    F_IN, H, T = 8, 32, 6
    CONV_LAYERS = 2                       # no_layers = CONV_LAYERS + 1
    NO_LAYERS = CONV_LAYERS + 1
    EPS = 0.0                             # GINConv eps init
    G_PAD = max(G_PAD_MIN, ((G + 7) // 8) * 8)

    key = jax.random.PRNGKey(0)
    keys = iter(jax.random.split(key, 64))

    # ---- synthetic graph batch: G ring graphs of N_PER_G nodes each ----
    src_list, dst_list = [], []
    for g in range(G):
        base = g * N_PER_G
        for i in range(N_PER_G):
            a = base + i
            b = base + (i + 1) % N_PER_G
            src_list += [a, b]
            dst_list += [b, a]
    src = jnp.asarray(src_list, jnp.int32)
    dst = jnp.asarray(dst_list, jnp.int32)
    batch = jnp.repeat(jnp.arange(G, dtype=jnp.int32), N_PER_G)      # [N]

    # dense adjacency: A[dst, src] += 1  -> sum aggregation of source features
    A = jnp.zeros((N, N), jnp.float32).at[dst, src].add(1.0)
    # A_hat = A + (1+eps)I, kept f32 (exact; bf16 A is exact for the integer
    # adjacency but the activations feeding the aggregation are f32 — the whole
    # aggregation stays f32 so results match an f32 reference exactly).
    A_hat = A + (1.0 + EPS) * jnp.eye(N, dtype=jnp.float32)

    # sum pooling matrix (global_add_pool): P[g, n] = 1 if batch[n] == g
    P = (batch[None, :] == jnp.arange(G)[:, None]).astype(jnp.float32)

    # ---- deterministic parameter init + eval-mode BN folding ----
    def lin_params(fan_in, fan_out):
        kw, kb = next(keys), next(keys)
        w = jax.random.normal(kw, (fan_in, fan_out), jnp.float32) / jnp.sqrt(fan_in)
        b = 0.1 * jax.random.normal(kb, (fan_out,), jnp.float32)
        return w, b

    def bn_params(dim):
        gamma = 1.0 + 0.1 * jax.random.normal(next(keys), (dim,), jnp.float32)
        beta = 0.1 * jax.random.normal(next(keys), (dim,), jnp.float32)
        mean = 0.1 * jax.random.normal(next(keys), (dim,), jnp.float32)
        var = 0.5 + jnp.abs(jax.random.normal(next(keys), (dim,), jnp.float32))
        return gamma, beta, mean, var

    def fold_bn(w, b, bn):
        gamma, beta, mean, var = bn
        scale = gamma / jnp.sqrt(var + 1e-5)
        return w * scale[None, :], ((b - mean) * scale + beta)[None, :]

    mlps, lins = [], []     # folded (W1,b1,W2,b2) per layer; readout (W,b) per layer
    dims_in = [F_IN] + [H] * CONV_LAYERS
    for layer in range(NO_LAYERS):
        w1, b1 = lin_params(dims_in[layer], H)
        bn1 = bn_params(H)
        w2, b2 = lin_params(H, H)
        bn2 = bn_params(H)
        w1f, b1f = fold_bn(w1, b1, bn1)
        w2f, b2f = fold_bn(w2, b2, bn2)
        mlps.append((w1f, b1f, w2f, b2f))
        wl, bl = lin_params(H, T)
        lins.append((wl, bl[None, :]))

    x = jax.random.normal(next(keys), (N, F_IN), jnp.float32)

    # ---- pack operands (15 small DMAs -> 7) ----
    # Pad the node-feature dim up to H so the first Linear stacks with the HxH
    # weights (zero padding is exact: padded x columns hit zero weight rows).
    assert F_IN <= H
    x_pad = jnp.zeros((N, H), jnp.float32).at[:, :F_IN].set(x)
    w1_0_pad = jnp.zeros((H, H), jnp.float32).at[:F_IN, :].set(mlps[0][0])

    w_mlp = jnp.stack([w1_0_pad, mlps[0][2]] +
                      [m for l in range(1, NO_LAYERS)
                       for m in (mlps[l][0], mlps[l][2])])            # [2*(L+1),H,H]
    b_mlp = jnp.stack([mlps[0][1], mlps[0][3]] +
                      [m for l in range(1, NO_LAYERS)
                       for m in (mlps[l][1], mlps[l][3])])            # [2*(L+1),1,H]
    # readout weights lane-padded to 128 (lane-dense output tiles)
    w_out = jnp.stack([jnp.zeros((H, T_PAD), jnp.float32).at[:, :T].set(lins[l][0])
                       for l in range(NO_LAYERS)])                    # [L+1,H,128]

    # All readout-bias constants precomputed once on the host side:
    #   layer 0: pool(lin(h)) bias term == counts * b0 ; layers >= 1: plain b_l
    counts = jnp.sum(P, axis=1)                                       # [G]
    bias_const = counts[:, None] * lins[0][1]
    for l in range(1, NO_LAYERS):
        bias_const = bias_const + lins[l][1]
    out_init = jnp.zeros((G_PAD, T_PAD), jnp.float32).at[:G, :T].set(bias_const)

    # G-padded sum-pooling matrix (rows >= G are zero)
    p_pad = jnp.zeros((G_PAD, N), jnp.float32).at[:G, :].set(P)

    # ---- forward: one fused pallas_call ----
    out = gin_forward(x_pad, A_hat, p_pad, w_mlp, b_mlp, w_out, out_init,
                      num_graphs=G, dim_target=T)
    jax.block_until_ready(out)
    assert out.shape == (G, T)

    # ---- pure-JAX reference (eval mode, folded BN); loose tol for MXU precision
    def reference():
        h = jnp.maximum(x @ mlps[0][0] + mlps[0][1], 0.0)
        h = jnp.maximum(h @ mlps[0][2] + mlps[0][3], 0.0)
        ref = P @ (h @ lins[0][0] + lins[0][1])
        for l in range(1, NO_LAYERS):
            h = A_hat @ h
            h = jnp.maximum(h @ mlps[l][0] + mlps[l][1], 0.0)
            h = jnp.maximum(h @ mlps[l][2] + mlps[l][3], 0.0)
            ref = ref + (P @ h) @ lins[l][0] + lins[l][1]
        return ref

    ref = reference()
    max_err = float(jnp.max(jnp.abs(out - ref)))
    assert jnp.allclose(out, ref, rtol=5e-2, atol=5e-2), f"max abs err {max_err}"
    print("KERNEL_OK")
</pallas_src>

<mosaic_0001>
module attributes {stable_mosaic.version = 11 : i64} {
  func.func @kernel(%arg0: memref<24x32xf32, #tpu.memory_space<vmem>>, %arg1: memref<24x24xf32, #tpu.memory_space<vmem>>, %arg2: memref<8x24xf32, #tpu.memory_space<vmem>>, %arg3: memref<6x32x32xf32, #tpu.memory_space<vmem>>, %arg4: memref<6x1x32xf32, #tpu.memory_space<vmem>>, %arg5: memref<3x32x128xf32, #tpu.memory_space<vmem>>, %arg6: memref<8x128xf32, #tpu.memory_space<vmem>>, %arg7: memref<8x128xf32, #tpu.memory_space<vmem>>) attributes {dimension_semantics = [], scalar_prefetch = 0 : i64, scratch_operands = 0 : i64, tpu.core_type = #tpu.core_type<tc>} {
    %c0 = arith.constant 0 : index
    %c0_0 = arith.constant 0 : index
    %0 = vector.load %arg2[%c0, %c0_0] : memref<8x24xf32, #tpu.memory_space<vmem>>, vector<8x24xf32>
    %c0_1 = arith.constant 0 : index
    %c0_2 = arith.constant 0 : index
    %1 = vector.load %arg6[%c0_1, %c0_2] : memref<8x128xf32, #tpu.memory_space<vmem>>, vector<8x128xf32>
    %c0_3 = arith.constant 0 : index
    %c0_4 = arith.constant 0 : index
    %2 = vector.load %arg0[%c0_3, %c0_4] : memref<24x32xf32, #tpu.memory_space<vmem>>, vector<24x32xf32>
    %c0_5 = arith.constant 0 : index
    %c0_6 = arith.constant 0 : index
    %c0_7 = arith.constant 0 : index
    %3 = vector.load %arg3[%c0_5, %c0_6, %c0_7] : memref<6x32x32xf32, #tpu.memory_space<vmem>>, vector<1x32x32xf32>
    %4 = vector.shape_cast %3 : vector<1x32x32xf32> to vector<32x32xf32>
    %cst = arith.constant dense<0.000000e+00> : vector<24x32xf32>
    %5 = tpu.matmul %2, %4, %cst {dimension_numbers = #tpu.dot_dimension_numbers<[1], [0], [0], [1], [0, 0, 1, 1], [], []>} : vector<24x32xf32>, vector<32x32xf32>, vector<24x32xf32> -> vector<24x32xf32>
    %c0_8 = arith.constant 0 : index
    %c0_9 = arith.constant 0 : index
    %c0_10 = arith.constant 0 : index
    %6 = vector.load %arg4[%c0_8, %c0_9, %c0_10] : memref<6x1x32xf32, #tpu.memory_space<vmem>>, vector<1x1x32xf32>
    %7 = vector.shape_cast %6 : vector<1x1x32xf32> to vector<1x32xf32>
    %8 = vector.broadcast %7 : vector<1x32xf32> to vector<24x32xf32>
    %9 = arith.addf %5, %8 : vector<24x32xf32>
    %cst_11 = arith.constant 0.000000e+00 : f32
    %10 = vector.broadcast %cst_11 : f32 to vector<24x32xf32>
    %11 = arith.maximumf %9, %10 : vector<24x32xf32>
    %c1 = arith.constant 1 : index
    %c0_12 = arith.constant 0 : index
    %c0_13 = arith.constant 0 : index
    %12 = vector.load %arg3[%c1, %c0_12, %c0_13] : memref<6x32x32xf32, #tpu.memory_space<vmem>>, vector<1x32x32xf32>
    %13 = vector.shape_cast %12 : vector<1x32x32xf32> to vector<32x32xf32>
    %cst_14 = arith.constant dense<0.000000e+00> : vector<24x32xf32>
    %14 = tpu.matmul %11, %13, %cst_14 {dimension_numbers = #tpu.dot_dimension_numbers<[1], [0], [0], [1], [0, 0, 1, 1], [], []>} : vector<24x32xf32>, vector<32x32xf32>, vector<24x32xf32> -> vector<24x32xf32>
    %c1_15 = arith.constant 1 : index
    %c0_16 = arith.constant 0 : index
    %c0_17 = arith.constant 0 : index
    %15 = vector.load %arg4[%c1_15, %c0_16, %c0_17] : memref<6x1x32xf32, #tpu.memory_space<vmem>>, vector<1x1x32xf32>
    %16 = vector.shape_cast %15 : vector<1x1x32xf32> to vector<1x32xf32>
    %17 = vector.broadcast %16 : vector<1x32xf32> to vector<24x32xf32>
    %18 = arith.addf %14, %17 : vector<24x32xf32>
    %cst_18 = arith.constant 0.000000e+00 : f32
    %19 = vector.broadcast %cst_18 : f32 to vector<24x32xf32>
    %20 = arith.maximumf %18, %19 : vector<24x32xf32>
    %cst_19 = arith.constant dense<0.000000e+00> : vector<8x32xf32>
    %21 = tpu.matmul %0, %20, %cst_19 {dimension_numbers = #tpu.dot_dimension_numbers<[1], [0], [0], [1], [0, 0, 1, 1], [], []>} : vector<8x24xf32>, vector<24x32xf32>, vector<8x32xf32> -> vector<8x32xf32>
    %c0_20 = arith.constant 0 : index
    %c0_21 = arith.constant 0 : index
    %c0_22 = arith.constant 0 : index
    %22 = vector.load %arg5[%c0_20, %c0_21, %c0_22] : memref<3x32x128xf32, #tpu.memory_space<vmem>>, vector<1x32x128xf32>
    %23 = vector.shape_cast %22 : vector<1x32x128xf32> to vector<32x128xf32>
    %cst_23 = arith.constant dense<0.000000e+00> : vector<8x128xf32>
    %24 = tpu.matmul %21, %23, %cst_23 {dimension_numbers = #tpu.dot_dimension_numbers<[1], [0], [0], [1], [0, 0, 1, 1], [], []>} : vector<8x32xf32>, vector<32x128xf32>, vector<8x128xf32> -> vector<8x128xf32>
    %25 = arith.addf %1, %24 : vector<8x128xf32>
    %c0_24 = arith.constant 0 : index
    %c0_25 = arith.constant 0 : index
    %26 = vector.load %arg1[%c0_24, %c0_25] : memref<24x24xf32, #tpu.memory_space<vmem>>, vector<24x24xf32>
    %cst_26 = arith.constant dense<0.000000e+00> : vector<24x32xf32>
    %27 = tpu.matmul %26, %20, %cst_26 {dimension_numbers = #tpu.dot_dimension_numbers<[1], [0], [0], [1], [0, 0, 1, 1], [], []>} : vector<24x24xf32>, vector<24x32xf32>, vector<24x32xf32> -> vector<24x32xf32>
    %c2 = arith.constant 2 : index
    %c0_27 = arith.constant 0 : index
    %c0_28 = arith.constant 0 : index
    %28 = vector.load %arg3[%c2, %c0_27, %c0_28] : memref<6x32x32xf32, #tpu.memory_space<vmem>>, vector<1x32x32xf32>
    %29 = vector.shape_cast %28 : vector<1x32x32xf32> to vector<32x32xf32>
    %cst_29 = arith.constant dense<0.000000e+00> : vector<24x32xf32>
    %30 = tpu.matmul %27, %29, %cst_29 {dimension_numbers = #tpu.dot_dimension_numbers<[1], [0], [0], [1], [0, 0, 1, 1], [], []>} : vector<24x32xf32>, vector<32x32xf32>, vector<24x32xf32> -> vector<24x32xf32>
    %c2_30 = arith.constant 2 : index
    %c0_31 = arith.constant 0 : index
    %c0_32 = arith.constant 0 : index
    %31 = vector.load %arg4[%c2_30, %c0_31, %c0_32] : memref<6x1x32xf32, #tpu.memory_space<vmem>>, vector<1x1x32xf32>
    %32 = vector.shape_cast %31 : vector<1x1x32xf32> to vector<1x32xf32>
    %33 = vector.broadcast %32 : vector<1x32xf32> to vector<24x32xf32>
    %34 = arith.addf %30, %33 : vector<24x32xf32>
    %cst_33 = arith.constant 0.000000e+00 : f32
    %35 = vector.broadcast %cst_33 : f32 to vector<24x32xf32>
    %36 = arith.maximumf %34, %35 : vector<24x32xf32>
    %c3 = arith.constant 3 : index
    %c0_34 = arith.constant 0 : index
    %c0_35 = arith.constant 0 : index
    %37 = vector.load %arg3[%c3, %c0_34, %c0_35] : memref<6x32x32xf32, #tpu.memory_space<vmem>>, vector<1x32x32xf32>
    %38 = vector.shape_cast %37 : vector<1x32x32xf32> to vector<32x32xf32>
    %cst_36 = arith.constant dense<0.000000e+00> : vector<24x32xf32>
    %39 = tpu.matmul %36, %38, %cst_36 {dimension_numbers = #tpu.dot_dimension_numbers<[1], [0], [0], [1], [0, 0, 1, 1], [], []>} : vector<24x32xf32>, vector<32x32xf32>, vector<24x32xf32> -> vector<24x32xf32>
    %c3_37 = arith.constant 3 : index
    %c0_38 = arith.constant 0 : index
    %c0_39 = arith.constant 0 : index
    %40 = vector.load %arg4[%c3_37, %c0_38, %c0_39] : memref<6x1x32xf32, #tpu.memory_space<vmem>>, vector<1x1x32xf32>
    %41 = vector.shape_cast %40 : vector<1x1x32xf32> to vector<1x32xf32>
    %42 = vector.broadcast %41 : vector<1x32xf32> to vector<24x32xf32>
    %43 = arith.addf %39, %42 : vector<24x32xf32>
    %cst_40 = arith.constant 0.000000e+00 : f32
    %44 = vector.broadcast %cst_40 : f32 to vector<24x32xf32>
    %45 = arith.maximumf %43, %44 : vector<24x32xf32>
    %cst_41 = arith.constant dense<0.000000e+00> : vector<8x32xf32>
    %46 = tpu.matmul %0, %45, %cst_41 {dimension_numbers = #tpu.dot_dimension_numbers<[1], [0], [0], [1], [0, 0, 1, 1], [], []>} : vector<8x24xf32>, vector<24x32xf32>, vector<8x32xf32> -> vector<8x32xf32>
    %c1_42 = arith.constant 1 : index
    %c0_43 = arith.constant 0 : index
    %c0_44 = arith.constant 0 : index
    %47 = vector.load %arg5[%c1_42, %c0_43, %c0_44] : memref<3x32x128xf32, #tpu.memory_space<vmem>>, vector<1x32x128xf32>
    %48 = vector.shape_cast %47 : vector<1x32x128xf32> to vector<32x128xf32>
    %cst_45 = arith.constant dense<0.000000e+00> : vector<8x128xf32>
    %49 = tpu.matmul %46, %48, %cst_45 {dimension_numbers = #tpu.dot_dimension_numbers<[1], [0], [0], [1], [0, 0, 1, 1], [], []>} : vector<8x32xf32>, vector<32x128xf32>, vector<8x128xf32> -> vector<8x128xf32>
    %50 = arith.addf %25, %49 : vector<8x128xf32>
    %c0_46 = arith.constant 0 : index
    %c0_47 = arith.constant 0 : index
    %51 = vector.load %arg1[%c0_46, %c0_47] : memref<24x24xf32, #tpu.memory_space<vmem>>, vector<24x24xf32>
    %cst_48 = arith.constant dense<0.000000e+00> : vector<24x32xf32>
    %52 = tpu.matmul %51, %45, %cst_48 {dimension_numbers = #tpu.dot_dimension_numbers<[1], [0], [0], [1], [0, 0, 1, 1], [], []>} : vector<24x24xf32>, vector<24x32xf32>, vector<24x32xf32> -> vector<24x32xf32>
    %c4 = arith.constant 4 : index
    %c0_49 = arith.constant 0 : index
    %c0_50 = arith.constant 0 : index
    %53 = vector.load %arg3[%c4, %c0_49, %c0_50] : memref<6x32x32xf32, #tpu.memory_space<vmem>>, vector<1x32x32xf32>
    %54 = vector.shape_cast %53 : vector<1x32x32xf32> to vector<32x32xf32>
    %cst_51 = arith.constant dense<0.000000e+00> : vector<24x32xf32>
    %55 = tpu.matmul %52, %54, %cst_51 {dimension_numbers = #tpu.dot_dimension_numbers<[1], [0], [0], [1], [0, 0, 1, 1], [], []>} : vector<24x32xf32>, vector<32x32xf32>, vector<24x32xf32> -> vector<24x32xf32>
    %c4_52 = arith.constant 4 : index
    %c0_53 = arith.constant 0 : index
    %c0_54 = arith.constant 0 : index
    %56 = vector.load %arg4[%c4_52, %c0_53, %c0_54] : memref<6x1x32xf32, #tpu.memory_space<vmem>>, vector<1x1x32xf32>
    %57 = vector.shape_cast %56 : vector<1x1x32xf32> to vector<1x32xf32>
    %58 = vector.broadcast %57 : vector<1x32xf32> to vector<24x32xf32>
    %59 = arith.addf %55, %58 : vector<24x32xf32>
    %cst_55 = arith.constant 0.000000e+00 : f32
    %60 = vector.broadcast %cst_55 : f32 to vector<24x32xf32>
    %61 = arith.maximumf %59, %60 : vector<24x32xf32>
    %c5 = arith.constant 5 : index
    %c0_56 = arith.constant 0 : index
    %c0_57 = arith.constant 0 : index
    %62 = vector.load %arg3[%c5, %c0_56, %c0_57] : memref<6x32x32xf32, #tpu.memory_space<vmem>>, vector<1x32x32xf32>
    %63 = vector.shape_cast %62 : vector<1x32x32xf32> to vector<32x32xf32>
    %cst_58 = arith.constant dense<0.000000e+00> : vector<24x32xf32>
    %64 = tpu.matmul %61, %63, %cst_58 {dimension_numbers = #tpu.dot_dimension_numbers<[1], [0], [0], [1], [0, 0, 1, 1], [], []>} : vector<24x32xf32>, vector<32x32xf32>, vector<24x32xf32> -> vector<24x32xf32>
    %c5_59 = arith.constant 5 : index
    %c0_60 = arith.constant 0 : index
    %c0_61 = arith.constant 0 : index
    %65 = vector.load %arg4[%c5_59, %c0_60, %c0_61] : memref<6x1x32xf32, #tpu.memory_space<vmem>>, vector<1x1x32xf32>
    %66 = vector.shape_cast %65 : vector<1x1x32xf32> to vector<1x32xf32>
    %67 = vector.broadcast %66 : vector<1x32xf32> to vector<24x32xf32>
    %68 = arith.addf %64, %67 : vector<24x32xf32>
    %cst_62 = arith.constant 0.000000e+00 : f32
    %69 = vector.broadcast %cst_62 : f32 to vector<24x32xf32>
    %70 = arith.maximumf %68, %69 : vector<24x32xf32>
    %cst_63 = arith.constant dense<0.000000e+00> : vector<8x32xf32>
    %71 = tpu.matmul %0, %70, %cst_63 {dimension_numbers = #tpu.dot_dimension_numbers<[1], [0], [0], [1], [0, 0, 1, 1], [], []>} : vector<8x24xf32>, vector<24x32xf32>, vector<8x32xf32> -> vector<8x32xf32>
    %c2_64 = arith.constant 2 : index
    %c0_65 = arith.constant 0 : index
    %c0_66 = arith.constant 0 : index
    %72 = vector.load %arg5[%c2_64, %c0_65, %c0_66] : memref<3x32x128xf32, #tpu.memory_space<vmem>>, vector<1x32x128xf32>
    %73 = vector.shape_cast %72 : vector<1x32x128xf32> to vector<32x128xf32>
    %cst_67 = arith.constant dense<0.000000e+00> : vector<8x128xf32>
    %74 = tpu.matmul %71, %73, %cst_67 {dimension_numbers = #tpu.dot_dimension_numbers<[1], [0], [0], [1], [0, 0, 1, 1], [], []>} : vector<8x32xf32>, vector<32x128xf32>, vector<8x128xf32> -> vector<8x128xf32>
    %75 = arith.addf %50, %74 : vector<8x128xf32>
    %c0_68 = arith.constant 0 : index
    %c0_69 = arith.constant 0 : index
    %76 = vector.load %arg7[%c0_68, %c0_69] : memref<8x128xf32, #tpu.memory_space<vmem>>, vector<8x128xf32>
    tpu.vector_store %arg7[%c0_68, %c0_69], %75 {strides = array<i32>} : memref<8x128xf32, #tpu.memory_space<vmem>>, vector<8x128xf32>,
    return
  }
}

</mosaic_0001>

<llo_original>
// kernel: tpu_custom_call.1
$region0: #{tpu_custom_call.1}
  #allocation0 [shape = 'u32[]', space=smem, size = 0x4, offset = 0x4, fixed_abs, tag = 'smem constant byte address 0x4 - core index']
  #allocation1 [shape = 'u32[72,128]{1,0:T(1,128)}', space=vmem, size = 0x9000, scoped, tag = 'internal scratch']
  %s0 = inlined_call_operand.hbm [shape: f32[24,32], index: 0, kind: input, shape index: {}]
  %s1 = inlined_call_operand.hbm [shape: f32[24,24], index: 1, kind: input, shape index: {}]
  %s2 = inlined_call_operand.hbm [shape: f32[8,24], index: 2, kind: input, shape index: {}]
  %s3 = inlined_call_operand.hbm [shape: f32[6,32,32], index: 3, kind: input, shape index: {}]
  %s4 = inlined_call_operand.hbm [shape: f32[6,1,32], index: 4, kind: input, shape index: {}]
  %s5 = inlined_call_operand.hbm [shape: f32[3,32,128], index: 5, kind: input, shape index: {}]
  %s6 = inlined_call_operand.hbm [shape: f32[8,128], index: 6, kind: input, shape index: {}]
  %s7 = inlined_call_operand.hbm [shape: f32[8,128], index: 7, kind: output, shape index: {}]
  %s8 = sld [smem:[#allocation0]]
  $region66: #{tpu_custom_call.1} parent=0
    _
  %s10 = ssub.s32 1, %s8
  %s11 = scalar_select 0, %s10, %s8
  $region1: #{tpu_custom_call.1} parent=0
    #allocation2 [shape = 'u8[12288]{0}', space=vmem, size = 0x3000, scoped, tag = 'input window, operand 0, single buffered']
    #allocation3 [shape = 's32[1]{0}', space=sflag, size = 0x4, scoped, tag = 'scoped memory for tpu_custom_call.1']
    #allocation4 [shape = 's32[1]{0}', space=sflag, size = 0x4, scoped, tag = 'scoped memory for tpu_custom_call.1']
    #allocation5 [shape = 'u8[12288]{0}', space=vmem, size = 0x3000, scoped, tag = 'input window, operand 1, single buffered']
    #allocation6 [shape = 's32[1]{0}', space=sflag, size = 0x4, scoped, tag = 'scoped memory for tpu_custom_call.1']
    #allocation7 [shape = 'u8[4096]{0}', space=vmem, size = 0x1000, scoped, tag = 'input window, operand 2, single buffered']
    #allocation8 [shape = 'u8[98304]{0}', space=vmem, size = 0x18000, scoped, tag = 'input window, operand 3, single buffered']
    #allocation9 [shape = 's32[1]{0}', space=sflag, size = 0x4, scoped, tag = 'scoped memory for tpu_custom_call.1']
    #allocation10 [shape = 'u8[3072]{0}', space=vmem, size = 0xc00, scoped, tag = 'input window, operand 4, single buffered']
    #allocation11 [shape = 'u8[49152]{0}', space=vmem, size = 0xc000, scoped, tag = 'input window, operand 5, single buffered']
    #allocation12 [shape = 's32[1]{0}', space=sflag, size = 0x4, scoped, tag = 'scoped memory for tpu_custom_call.1']
    #allocation13 [shape = 'u8[4096]{0}', space=vmem, size = 0x1000, scoped, tag = 'input window, operand 6, single buffered']
    #allocation14 [shape = 'u8[4096]{0}', space=vmem, size = 0x1000, scoped, tag = 'output window, operand 0, single buffered']
    %12 = vsyncpa [#allocation3], 0
    %13 = vsyncpa [#allocation6], 0
    %14 = vsyncpa [#allocation9], 0
    %15 = vsyncpa [#allocation12], 0
    %16 = vsyncpa [#allocation4], 0
    // Predicated region
    $region2: #{tpu_custom_call.1} parent=1 // pred_check
      _
    $region3: #{tpu_custom_call.1} parent=1 // pred_check_branch
      %18 = sbr.rel (0) target = $region5
    $region4: #{tpu_custom_call.1} parent=1 // pred_region
      %20 = vsyncadd [#allocation3], 0
      %s21 = sshll.u32 %s0, 4
      %s22 = int_to_ptr.hbm [resolvable:$true] %s21
      %s23 = sshll.u32 [#allocation2], 4
      %s24 = int_to_ptr.vmem [resolvable:$true] %s23
      %29 = dma.hbm_to_vmem [thread:$0]  %s22, 384, %s24, [#allocation3], 128, 128, 8
    $region5: #{tpu_custom_call.1} parent=1 // pred_fallthru
      _
    // Predicated region
    $region6: #{tpu_custom_call.1} parent=1 // pred_check
      _
    $region7: #{tpu_custom_call.1} parent=1 // pred_check_branch
      %31 = sbr.rel (0) target = $region9
    $region8: #{tpu_custom_call.1} parent=1 // pred_region
      %33 = vsyncadd [#allocation6], 0
      %s34 = sshll.u32 %s1, 4
      %s35 = int_to_ptr.hbm [resolvable:$true] %s34
      %s36 = sshll.u32 [#allocation5], 4
      %s37 = int_to_ptr.vmem [resolvable:$true] %s36
      %42 = dma.hbm_to_vmem [thread:$0]  %s35, 384, %s37, [#allocation6], 128, 128, 8
    $region9: #{tpu_custom_call.1} parent=1 // pred_fallthru
      _
    // Predicated region
    $region10: #{tpu_custom_call.1} parent=1 // pred_check
      _
    $region11: #{tpu_custom_call.1} parent=1 // pred_check_branch
      %44 = sbr.rel (0) target = $region13
    $region12: #{tpu_custom_call.1} parent=1 // pred_region
      %46 = vsyncadd [#allocation6], 0
      %s48 = sshll.u32 %s2, 4
      %s49 = int_to_ptr.hbm [resolvable:$true] %s48
      %s50 = sshll.u32 [#allocation7], 4
      %s51 = int_to_ptr.vmem [resolvable:$true] %s50
      %53 = dma.hbm_to_vmem [thread:$0]  %s49, 128, %s51, [#allocation6]
    $region13: #{tpu_custom_call.1} parent=1 // pred_fallthru
      _
    // Predicated region
    $region14: #{tpu_custom_call.1} parent=1 // pred_check
      _
    $region15: #{tpu_custom_call.1} parent=1 // pred_check_branch
      %55 = sbr.rel (0) target = $region17
    $region16: #{tpu_custom_call.1} parent=1 // pred_region
      %57 = vsyncadd [#allocation9], 0
      %s58 = sshll.u32 %s3, 4
      %s59 = int_to_ptr.hbm [resolvable:$true] %s58
      %s60 = sshll.u32 [#allocation8], 4
      %s61 = int_to_ptr.vmem [resolvable:$true] %s60
      %66 = dma.hbm_to_vmem [thread:$0]  %s59, 3072, %s61, [#allocation9], 128, 128, 8
    $region17: #{tpu_custom_call.1} parent=1 // pred_fallthru
      _
    // Predicated region
    $region18: #{tpu_custom_call.1} parent=1 // pred_check
      _
    $region19: #{tpu_custom_call.1} parent=1 // pred_check_branch
      %68 = sbr.rel (0) target = $region21
    $region20: #{tpu_custom_call.1} parent=1 // pred_region
      %70 = vsyncadd [#allocation9], 0
      %s71 = sshll.u32 %s4, 4
      %s72 = int_to_ptr.hbm [resolvable:$true] %s71
      %s73 = sshll.u32 [#allocation10], 4
      %s74 = int_to_ptr.vmem [resolvable:$true] %s73
      %79 = dma.hbm_to_vmem [thread:$0]  %s72, 96, %s74, [#allocation9], 16, 16, 1
    $region21: #{tpu_custom_call.1} parent=1 // pred_fallthru
      _
    // Predicated region
    $region22: #{tpu_custom_call.1} parent=1 // pred_check
      _
    $region23: #{tpu_custom_call.1} parent=1 // pred_check_branch
      %81 = sbr.rel (0) target = $region25
    $region24: #{tpu_custom_call.1} parent=1 // pred_region
      %83 = vsyncadd [#allocation12], 0
      %s84 = sshll.u32 %s5, 4
      %s85 = int_to_ptr.hbm [resolvable:$true] %s84
      %s86 = sshll.u32 [#allocation11], 4
      %s87 = int_to_ptr.vmem [resolvable:$true] %s86
      %92 = dma.hbm_to_vmem [thread:$0]  %s85, 1536, %s87, [#allocation12], 128, 128, 8
    $region25: #{tpu_custom_call.1} parent=1 // pred_fallthru
      _
    // Predicated region
    $region26: #{tpu_custom_call.1} parent=1 // pred_check
      _
    $region27: #{tpu_custom_call.1} parent=1 // pred_check_branch
      %94 = sbr.rel (0) target = $region29
    $region28: #{tpu_custom_call.1} parent=1 // pred_region
      %96 = vsyncadd [#allocation12], 0
      %s98 = sshll.u32 %s6, 4
      %s99 = int_to_ptr.hbm [resolvable:$true] %s98
      %s100 = sshll.u32 [#allocation13], 4
      %s101 = int_to_ptr.vmem [resolvable:$true] %s100
      %103 = dma.hbm_to_vmem [thread:$0]  %s99, 128, %s101, [#allocation12]
    $region29: #{tpu_custom_call.1} parent=1 // pred_fallthru
      _
    // Predicated region
    $region30: #{tpu_custom_call.1} parent=1 // pred_check
      _
    $region31: #{tpu_custom_call.1} parent=1 // pred_check_branch
      %105 = sbr.rel (0) target = $region33
    $region32: #{tpu_custom_call.1} parent=1 // pred_region
      %107 = dma.done [#allocation3], 384
    $region33: #{tpu_custom_call.1} parent=1 // pred_fallthru
      _
    // Predicated region
    $region34: #{tpu_custom_call.1} parent=1 // pred_check
      _
    $region35: #{tpu_custom_call.1} parent=1 // pred_check_branch
      %109 = sbr.rel (0) target = $region37
    $region36: #{tpu_custom_call.1} parent=1 // pred_region
      %111 = dma.done [#allocation6], 384
    $region37: #{tpu_custom_call.1} parent=1 // pred_fallthru
      _
    // Predicated region
    $region38: #{tpu_custom_call.1} parent=1 // pred_check
      _
    $region39: #{tpu_custom_call.1} parent=1 // pred_check_branch
      %113 = sbr.rel (0) target = $region41
    $region40: #{tpu_custom_call.1} parent=1 // pred_region
      %115 = dma.done [#allocation6], 128
    $region41: #{tpu_custom_call.1} parent=1 // pred_fallthru
      _
    // Predicated region
    $region42: #{tpu_custom_call.1} parent=1 // pred_check
      _
    $region43: #{tpu_custom_call.1} parent=1 // pred_check_branch
      %117 = sbr.rel (0) target = $region45
    $region44: #{tpu_custom_call.1} parent=1 // pred_region
      %119 = dma.done [#allocation9], 3072
    $region45: #{tpu_custom_call.1} parent=1 // pred_fallthru
      _
    // Predicated region
    $region46: #{tpu_custom_call.1} parent=1 // pred_check
      _
    $region47: #{tpu_custom_call.1} parent=1 // pred_check_branch
      %121 = sbr.rel (0) target = $region49
    $region48: #{tpu_custom_call.1} parent=1 // pred_region
      %123 = dma.done [#allocation9], 96
    $region49: #{tpu_custom_call.1} parent=1 // pred_fallthru
      _
    // Predicated region
    $region50: #{tpu_custom_call.1} parent=1 // pred_check
      _
    $region51: #{tpu_custom_call.1} parent=1 // pred_check_branch
      %125 = sbr.rel (0) target = $region53
    $region52: #{tpu_custom_call.1} parent=1 // pred_region
      %127 = dma.done [#allocation12], 1536
    $region53: #{tpu_custom_call.1} parent=1 // pred_fallthru
      _
    // Predicated region
    $region54: #{tpu_custom_call.1} parent=1 // pred_check
      _
    $region55: #{tpu_custom_call.1} parent=1 // pred_check_branch
      %129 = sbr.rel (0) target = $region57
    $region56: #{tpu_custom_call.1} parent=1 // pred_region
      %131 = dma.done [#allocation12], 128
    $region57: #{tpu_custom_call.1} parent=1 // pred_fallthru
      _
    %v132 = vld [vmem:[#allocation7] sm:$0xff]
    %v133 = vld [vmem:[#allocation13] sm:$0xff]
    %v134 = vld [vmem:[#allocation2] sm:$0xff]
    %v135 = vld [vmem:[#allocation2 + $0x8] sm:$0xff]
    %v136 = vld [vmem:[#allocation2 + $0x10] sm:$0xff]
    %v137 = vld [vmem:[#allocation8] sm:$0xff]
    %v138 = vld [vmem:[#allocation8 + $0x8] sm:$0xff]
    %v139 = vld [vmem:[#allocation8 + $0x10] sm:$0xff]
    %v140 = vld [vmem:[#allocation8 + $0x18] sm:$0xff]
    %v141 = vld [vmem:[#allocation10] sm:$0x1]
    %v143 = vperm.slane %v141, 0
    %vm145 = vcmask 261120
    %v147 = vsel %vm145, %v134, 0
    %v150 = vsel %vm145, %v135, 0
    %v153 = vsel %vm145, %v136, 0
    %155 = vmatpush.msra.mxu0 0.0
    %156 = vmatpush.msra.mxu0 0.0
    %157 = vmatpush.msra.mxu0 0.0
    %158 = vmatpush.msra.mxu0 0.0
    %159 = vmatpush.msra.mxu0 0.0
    %160 = vmatpush.msra.mxu0 0.0
    %161 = vmatpush.msra.mxu0 0.0
    %162 = vmatpush.msra.mxu0 0.0
    %163 = vmatpush.msra.mxu0 0.0
    %164 = vmatpush.msra.mxu0 0.0
    %165 = vmatpush.msra.mxu0 0.0
    %166 = vmatpush.msra.mxu0 0.0
    %167 = vmatpush.msra.mxu0 %v140
    %168 = vmatpush.msra.mxu0 %v139
    %169 = vmatpush.msra.mxu0 %v138
    %170 = vmatpush.msra.mxu0 %v137
    %171 = vmatmul.f32.gmra.mxu0 %v147
    %v172 = vpop.f32.mrf.mxu0
    %v173 = vadd.f32 %v143, %v172
    %174 = vmatmul.f32.gmra.mxu0 %v150
    %v175 = vpop.f32.mrf.mxu0
    %v176 = vadd.f32 %v143, %v175
    %177 = vmatmul.f32.gmra.mxu0 %v153
    %v178 = vpop.f32.mrf.mxu0
    %v179 = vadd.f32 %v143, %v178
    %180 = vdwg.mxu0
    %v181 = vmax.f32 %v173, 0.0
    %v182 = vmax.f32 %v176, 0.0
    %v183 = vmax.f32 %v179, 0.0
    %s184 = scalar_lea.vmem [#allocation8], 32
    %v185 = vld [vmem:[%s184] sm:$0xff]
    %v186 = vld [vmem:[%s184 + $0x8] sm:$0xff]
    %v187 = vld [vmem:[%s184 + $0x10] sm:$0xff]
    %v188 = vld [vmem:[%s184 + $0x18] sm:$0xff]
    %s189 = scalar_lea.vmem [#allocation10], 1
    %v190 = vld [vmem:[%s189] sm:$0x1]
    %v192 = vperm.slane %v190, 0
    %v195 = vsel %vm145, %v181, 0
    %v198 = vsel %vm145, %v182, 0
    %v201 = vsel %vm145, %v183, 0
    %203 = vmatpush.msra.mxu0 0.0
    %204 = vmatpush.msra.mxu0 0.0
    %205 = vmatpush.msra.mxu0 0.0
    %206 = vmatpush.msra.mxu0 0.0
    %207 = vmatpush.msra.mxu0 0.0
    %208 = vmatpush.msra.mxu0 0.0
    %209 = vmatpush.msra.mxu0 0.0
    %210 = vmatpush.msra.mxu0 0.0
    %211 = vmatpush.msra.mxu0 0.0
    %212 = vmatpush.msra.mxu0 0.0
    %213 = vmatpush.msra.mxu0 0.0
    %214 = vmatpush.msra.mxu0 0.0
    %215 = vmatpush.msra.mxu0 %v188
    %216 = vmatpush.msra.mxu0 %v187
    %217 = vmatpush.msra.mxu0 %v186
    %218 = vmatpush.msra.mxu0 %v185
    %219 = vmatmul.f32.gmra.mxu0 %v195
    %v220 = vpop.f32.mrf.mxu0
    %v221 = vadd.f32 %v192, %v220
    %222 = vmatmul.f32.gmra.mxu0 %v198
    %v223 = vpop.f32.mrf.mxu0
    %v224 = vadd.f32 %v192, %v223
    %225 = vmatmul.f32.gmra.mxu0 %v201
    %v226 = vpop.f32.mrf.mxu0
    %v227 = vadd.f32 %v192, %v226
    %228 = vdwg.mxu0
    %v229 = vmax.f32 %v221, 0.0
    %v230 = vmax.f32 %v224, 0.0
    %v231 = vmax.f32 %v227, 0.0
    %vm232 = vcmask 195584
    %v234 = vsel %vm232, %v132, 0
    %236 = vmatpush.msra.mxu0 0.0
    %237 = vmatpush.msra.mxu0 0.0
    %238 = vmatpush.msra.mxu0 0.0
    %239 = vmatpush.msra.mxu0 0.0
    %240 = vmatpush.msra.mxu0 0.0
    %241 = vmatpush.msra.mxu0 0.0
    %242 = vmatpush.msra.mxu0 0.0
    %243 = vmatpush.msra.mxu0 0.0
    %244 = vmatpush.msra.mxu0 0.0
    %245 = vmatpush.msra.mxu0 0.0
    %246 = vmatpush.msra.mxu0 0.0
    %247 = vmatpush.msra.mxu0 0.0
    %248 = vmatpush.msra.mxu0 0.0
    %249 = vmatpush.msra.mxu0 %v231
    %250 = vmatpush.msra.mxu0 %v230
    %251 = vmatpush.msra.mxu0 %v229
    %252 = vmatmul.f32.gmra.mxu0 %v234
    %v253 = vpop.f32.mrf.mxu0
    %v254 = vadd.f32 0.0, %v253
    %255 = vdwg.mxu0
    %v256 = vld [vmem:[#allocation11] sm:$0xff]
    %v257 = vld [vmem:[#allocation11 + $0x8] sm:$0xff]
    %v258 = vld [vmem:[#allocation11 + $0x10] sm:$0xff]
    %v259 = vld [vmem:[#allocation11 + $0x18] sm:$0xff]
    %v261 = vsel %vm145, %v254, 0
    %263 = vmatpush.msra.mxu0 0.0
    %264 = vmatpush.msra.mxu0 0.0
    %265 = vmatpush.msra.mxu0 0.0
    %266 = vmatpush.msra.mxu0 0.0
    %267 = vmatpush.msra.mxu0 0.0
    %268 = vmatpush.msra.mxu0 0.0
    %269 = vmatpush.msra.mxu0 0.0
    %270 = vmatpush.msra.mxu0 0.0
    %271 = vmatpush.msra.mxu0 0.0
    %272 = vmatpush.msra.mxu0 0.0
    %273 = vmatpush.msra.mxu0 0.0
    %274 = vmatpush.msra.mxu0 0.0
    %275 = vmatpush.msra.mxu0 %v259
    %276 = vmatpush.msra.mxu0 %v258
    %277 = vmatpush.msra.mxu0 %v257
    %278 = vmatpush.msra.mxu0 %v256
    %279 = vmatmul.f32.gmra.mxu0 %v261
    %v280 = vpop.f32.mrf.mxu0
    %v281 = vadd.f32 0.0, %v280
    %282 = vdwg.mxu0
    %v283 = vadd.f32 %v133, %v281
    %v284 = vld [vmem:[#allocation5] sm:$0xff]
    %v285 = vld [vmem:[#allocation5 + $0x8] sm:$0xff]
    %v286 = vld [vmem:[#allocation5 + $0x10] sm:$0xff]
    %v288 = vsel %vm232, %v284, 0
    %v291 = vsel %vm232, %v285, 0
    %v294 = vsel %vm232, %v286, 0
    %296 = vmatpush.msra.mxu0 0.0
    %297 = vmatpush.msra.mxu0 0.0
    %298 = vmatpush.msra.mxu0 0.0
    %299 = vmatpush.msra.mxu0 0.0
    %300 = vmatpush.msra.mxu0 0.0
    %301 = vmatpush.msra.mxu0 0.0
    %302 = vmatpush.msra.mxu0 0.0
    %303 = vmatpush.msra.mxu0 0.0
    %304 = vmatpush.msra.mxu0 0.0
    %305 = vmatpush.msra.mxu0 0.0
    %306 = vmatpush.msra.mxu0 0.0
    %307 = vmatpush.msra.mxu0 0.0
    %308 = vmatpush.msra.mxu0 0.0
    %309 = vmatpush.msra.mxu0 %v231
    %310 = vmatpush.msra.mxu0 %v230
    %311 = vmatpush.msra.mxu0 %v229
    %312 = vmatmul.f32.gmra.mxu0 %v288
    %v313 = vpop.f32.mrf.mxu0
    %v314 = vadd.f32 0.0, %v313
    %315 = vmatmul.f32.gmra.mxu0 %v291
    %v316 = vpop.f32.mrf.mxu0
    %v317 = vadd.f32 0.0, %v316
    %318 = vmatmul.f32.gmra.mxu0 %v294
    %v319 = vpop.f32.mrf.mxu0
    %v320 = vadd.f32 0.0, %v319
    %321 = vdwg.mxu0
    %s322 = scalar_lea.vmem [#allocation8], 64
    %v323 = vld [vmem:[%s322] sm:$0xff]
    %v324 = vld [vmem:[%s322 + $0x8] sm:$0xff]
    %v325 = vld [vmem:[%s322 + $0x10] sm:$0xff]
    %v326 = vld [vmem:[%s322 + $0x18] sm:$0xff]
    %s327 = scalar_lea.vmem [#allocation10], 2
    %v328 = vld [vmem:[%s327] sm:$0x1]
    %v330 = vperm.slane %v328, 0
    %v333 = vsel %vm145, %v314, 0
    %v336 = vsel %vm145, %v317, 0
    %v339 = vsel %vm145, %v320, 0
    %341 = vmatpush.msra.mxu0 0.0
    %342 = vmatpush.msra.mxu0 0.0
    %343 = vmatpush.msra.mxu0 0.0
    %344 = vmatpush.msra.mxu0 0.0
    %345 = vmatpush.msra.mxu0 0.0
    %346 = vmatpush.msra.mxu0 0.0
    %347 = vmatpush.msra.mxu0 0.0
    %348 = vmatpush.msra.mxu0 0.0
    %349 = vmatpush.msra.mxu0 0.0
    %350 = vmatpush.msra.mxu0 0.0
    %351 = vmatpush.msra.mxu0 0.0
    %352 = vmatpush.msra.mxu0 0.0
    %353 = vmatpush.msra.mxu0 %v326
    %354 = vmatpush.msra.mxu0 %v325
    %355 = vmatpush.msra.mxu0 %v324
    %356 = vmatpush.msra.mxu0 %v323
    %357 = vmatmul.f32.gmra.mxu0 %v333
    %v358 = vpop.f32.mrf.mxu0
    %v359 = vadd.f32 %v330, %v358
    %360 = vmatmul.f32.gmra.mxu0 %v336
    %v361 = vpop.f32.mrf.mxu0
    %v362 = vadd.f32 %v330, %v361
    %363 = vmatmul.f32.gmra.mxu0 %v339
    %v364 = vpop.f32.mrf.mxu0
    %v365 = vadd.f32 %v330, %v364
    %366 = vdwg.mxu0
    %v367 = vmax.f32 %v359, 0.0
    %v368 = vmax.f32 %v362, 0.0
    %v369 = vmax.f32 %v365, 0.0
    %s370 = scalar_lea.vmem [#allocation8], 96
    %v371 = vld [vmem:[%s370] sm:$0xff]
    %v372 = vld [vmem:[%s370 + $0x8] sm:$0xff]
    %v373 = vld [vmem:[%s370 + $0x10] sm:$0xff]
    %v374 = vld [vmem:[%s370 + $0x18] sm:$0xff]
    %s375 = scalar_lea.vmem [#allocation10], 3
    %v376 = vld [vmem:[%s375] sm:$0x1]
    %v378 = vperm.slane %v376, 0
    %v381 = vsel %vm145, %v367, 0
    %v384 = vsel %vm145, %v368, 0
    %v387 = vsel %vm145, %v369, 0
    %389 = vmatpush.msra.mxu0 0.0
    %390 = vmatpush.msra.mxu0 0.0
    %391 = vmatpush.msra.mxu0 0.0
    %392 = vmatpush.msra.mxu0 0.0
    %393 = vmatpush.msra.mxu0 0.0
    %394 = vmatpush.msra.mxu0 0.0
    %395 = vmatpush.msra.mxu0 0.0
    %396 = vmatpush.msra.mxu0 0.0
    %397 = vmatpush.msra.mxu0 0.0
    %398 = vmatpush.msra.mxu0 0.0
    %399 = vmatpush.msra.mxu0 0.0
    %400 = vmatpush.msra.mxu0 0.0
    %401 = vmatpush.msra.mxu0 %v374
    %402 = vmatpush.msra.mxu0 %v373
    %403 = vmatpush.msra.mxu0 %v372
    %404 = vmatpush.msra.mxu0 %v371
    %405 = vmatmul.f32.gmra.mxu0 %v381
    %v406 = vpop.f32.mrf.mxu0
    %v407 = vadd.f32 %v378, %v406
    %408 = vmatmul.f32.gmra.mxu0 %v384
    %v409 = vpop.f32.mrf.mxu0
    %v410 = vadd.f32 %v378, %v409
    %411 = vmatmul.f32.gmra.mxu0 %v387
    %v412 = vpop.f32.mrf.mxu0
    %v413 = vadd.f32 %v378, %v412
    %414 = vdwg.mxu0
    %v415 = vmax.f32 %v407, 0.0
    %v416 = vmax.f32 %v410, 0.0
    %v417 = vmax.f32 %v413, 0.0
    %418 = vmatpush.msra.mxu0 0.0
    %419 = vmatpush.msra.mxu0 0.0
    %420 = vmatpush.msra.mxu0 0.0
    %421 = vmatpush.msra.mxu0 0.0
    %422 = vmatpush.msra.mxu0 0.0
    %423 = vmatpush.msra.mxu0 0.0
    %424 = vmatpush.msra.mxu0 0.0
    %425 = vmatpush.msra.mxu0 0.0
    %426 = vmatpush.msra.mxu0 0.0
    %427 = vmatpush.msra.mxu0 0.0
    %428 = vmatpush.msra.mxu0 0.0
    %429 = vmatpush.msra.mxu0 0.0
    %430 = vmatpush.msra.mxu0 0.0
    %431 = vmatpush.msra.mxu0 %v417
    %432 = vmatpush.msra.mxu0 %v416
    %433 = vmatpush.msra.mxu0 %v415
    %434 = vmatmul.f32.gmra.mxu0 %v234
    %v435 = vpop.f32.mrf.mxu0
    %v436 = vadd.f32 0.0, %v435
    %437 = vdwg.mxu0
    %s438 = scalar_lea.vmem [#allocation11], 32
    %v439 = vld [vmem:[%s438] sm:$0xff]
    %v440 = vld [vmem:[%s438 + $0x8] sm:$0xff]
    %v441 = vld [vmem:[%s438 + $0x10] sm:$0xff]
    %v442 = vld [vmem:[%s438 + $0x18] sm:$0xff]
    %v444 = vsel %vm145, %v436, 0
    %446 = vmatpush.msra.mxu0 0.0
    %447 = vmatpush.msra.mxu0 0.0
    %448 = vmatpush.msra.mxu0 0.0
    %449 = vmatpush.msra.mxu0 0.0
    %450 = vmatpush.msra.mxu0 0.0
    %451 = vmatpush.msra.mxu0 0.0
    %452 = vmatpush.msra.mxu0 0.0
    %453 = vmatpush.msra.mxu0 0.0
    %454 = vmatpush.msra.mxu0 0.0
    %455 = vmatpush.msra.mxu0 0.0
    %456 = vmatpush.msra.mxu0 0.0
    %457 = vmatpush.msra.mxu0 0.0
    %458 = vmatpush.msra.mxu0 %v442
    %459 = vmatpush.msra.mxu0 %v441
    %460 = vmatpush.msra.mxu0 %v440
    %461 = vmatpush.msra.mxu0 %v439
    %462 = vmatmul.f32.gmra.mxu0 %v444
    %v463 = vpop.f32.mrf.mxu0
    %v464 = vadd.f32 0.0, %v463
    %465 = vdwg.mxu0
    %v466 = vadd.f32 %v283, %v464
    %467 = vmatpush.msra.mxu0 0.0
    %468 = vmatpush.msra.mxu0 0.0
    %469 = vmatpush.msra.mxu0 0.0
    %470 = vmatpush.msra.mxu0 0.0
    %471 = vmatpush.msra.mxu0 0.0
    %472 = vmatpush.msra.mxu0 0.0
    %473 = vmatpush.msra.mxu0 0.0
    %474 = vmatpush.msra.mxu0 0.0
    %475 = vmatpush.msra.mxu0 0.0
    %476 = vmatpush.msra.mxu0 0.0
    %477 = vmatpush.msra.mxu0 0.0
    %478 = vmatpush.msra.mxu0 0.0
    %479 = vmatpush.msra.mxu0 0.0
    %480 = vmatpush.msra.mxu0 %v417
    %481 = vmatpush.msra.mxu0 %v416
    %482 = vmatpush.msra.mxu0 %v415
    %483 = vmatmul.f32.gmra.mxu0 %v288
    %v484 = vpop.f32.mrf.mxu0
    %v485 = vadd.f32 0.0, %v484
    %486 = vmatmul.f32.gmra.mxu0 %v291
    %v487 = vpop.f32.mrf.mxu0
    %v488 = vadd.f32 0.0, %v487
    %489 = vmatmul.f32.gmra.mxu0 %v294
    %v490 = vpop.f32.mrf.mxu0
    %v491 = vadd.f32 0.0, %v490
    %492 = vdwg.mxu0
    %s493 = scalar_lea.vmem [#allocation8], 128
    %v494 = vld [vmem:[%s493] sm:$0xff]
    %v495 = vld [vmem:[%s493 + $0x8] sm:$0xff]
    %v496 = vld [vmem:[%s493 + $0x10] sm:$0xff]
    %v497 = vld [vmem:[%s493 + $0x18] sm:$0xff]
    %s498 = scalar_lea.vmem [#allocation10], 4
    %v499 = vld [vmem:[%s498] sm:$0x1]
    %v501 = vperm.slane %v499, 0
    %v504 = vsel %vm145, %v485, 0
    %v507 = vsel %vm145, %v488, 0
    %v510 = vsel %vm145, %v491, 0
    %512 = vmatpush.msra.mxu0 0.0
    %513 = vmatpush.msra.mxu0 0.0
    %514 = vmatpush.msra.mxu0 0.0
    %515 = vmatpush.msra.mxu0 0.0
    %516 = vmatpush.msra.mxu0 0.0
    %517 = vmatpush.msra.mxu0 0.0
    %518 = vmatpush.msra.mxu0 0.0
    %519 = vmatpush.msra.mxu0 0.0
    %520 = vmatpush.msra.mxu0 0.0
    %521 = vmatpush.msra.mxu0 0.0
    %522 = vmatpush.msra.mxu0 0.0
    %523 = vmatpush.msra.mxu0 0.0
    %524 = vmatpush.msra.mxu0 %v497
    %525 = vmatpush.msra.mxu0 %v496
    %526 = vmatpush.msra.mxu0 %v495
    %527 = vmatpush.msra.mxu0 %v494
    %528 = vmatmul.f32.gmra.mxu0 %v504
    %v529 = vpop.f32.mrf.mxu0
    %v530 = vadd.f32 %v501, %v529
    %531 = vmatmul.f32.gmra.mxu0 %v507
    %v532 = vpop.f32.mrf.mxu0
    %v533 = vadd.f32 %v501, %v532
    %534 = vmatmul.f32.gmra.mxu0 %v510
    %v535 = vpop.f32.mrf.mxu0
    %v536 = vadd.f32 %v501, %v535
    %537 = vdwg.mxu0
    %v538 = vmax.f32 %v530, 0.0
    %v539 = vmax.f32 %v533, 0.0
    %v540 = vmax.f32 %v536, 0.0
    %s541 = scalar_lea.vmem [#allocation8], 160
    %v542 = vld [vmem:[%s541] sm:$0xff]
    %v543 = vld [vmem:[%s541 + $0x8] sm:$0xff]
    %v544 = vld [vmem:[%s541 + $0x10] sm:$0xff]
    %v545 = vld [vmem:[%s541 + $0x18] sm:$0xff]
    %s546 = scalar_lea.vmem [#allocation10], 5
    %v547 = vld [vmem:[%s546] sm:$0x1]
    %v549 = vperm.slane %v547, 0
    %v552 = vsel %vm145, %v538, 0
    %v555 = vsel %vm145, %v539, 0
    %v558 = vsel %vm145, %v540, 0
    %560 = vmatpush.msra.mxu0 0.0
    %561 = vmatpush.msra.mxu0 0.0
    %562 = vmatpush.msra.mxu0 0.0
    %563 = vmatpush.msra.mxu0 0.0
    %564 = vmatpush.msra.mxu0 0.0
    %565 = vmatpush.msra.mxu0 0.0
    %566 = vmatpush.msra.mxu0 0.0
    %567 = vmatpush.msra.mxu0 0.0
    %568 = vmatpush.msra.mxu0 0.0
    %569 = vmatpush.msra.mxu0 0.0
    %570 = vmatpush.msra.mxu0 0.0
    %571 = vmatpush.msra.mxu0 0.0
    %572 = vmatpush.msra.mxu0 %v545
    %573 = vmatpush.msra.mxu0 %v544
    %574 = vmatpush.msra.mxu0 %v543
    %575 = vmatpush.msra.mxu0 %v542
    %576 = vmatmul.f32.gmra.mxu0 %v552
    %v577 = vpop.f32.mrf.mxu0
    %v578 = vadd.f32 %v549, %v577
    %579 = vmatmul.f32.gmra.mxu0 %v555
    %v580 = vpop.f32.mrf.mxu0
    %v581 = vadd.f32 %v549, %v580
    %582 = vmatmul.f32.gmra.mxu0 %v558
    %v583 = vpop.f32.mrf.mxu0
    %v584 = vadd.f32 %v549, %v583
    %585 = vdwg.mxu0
    %v586 = vmax.f32 %v578, 0.0
    %v587 = vmax.f32 %v581, 0.0
    %v588 = vmax.f32 %v584, 0.0
    %589 = vmatpush.msra.mxu0 0.0
    %590 = vmatpush.msra.mxu0 0.0
    %591 = vmatpush.msra.mxu0 0.0
    %592 = vmatpush.msra.mxu0 0.0
    %593 = vmatpush.msra.mxu0 0.0
    %594 = vmatpush.msra.mxu0 0.0
    %595 = vmatpush.msra.mxu0 0.0
    %596 = vmatpush.msra.mxu0 0.0
    %597 = vmatpush.msra.mxu0 0.0
    %598 = vmatpush.msra.mxu0 0.0
    %599 = vmatpush.msra.mxu0 0.0
    %600 = vmatpush.msra.mxu0 0.0
    %601 = vmatpush.msra.mxu0 0.0
    %602 = vmatpush.msra.mxu0 %v588
    %603 = vmatpush.msra.mxu0 %v587
    %604 = vmatpush.msra.mxu0 %v586
    %605 = vmatmul.f32.gmra.mxu0 %v234
    %v606 = vpop.f32.mrf.mxu0
    %v607 = vadd.f32 0.0, %v606
    %608 = vdwg.mxu0
    %s609 = scalar_lea.vmem [#allocation11], 64
    %v610 = vld [vmem:[%s609] sm:$0xff]
    %v611 = vld [vmem:[%s609 + $0x8] sm:$0xff]
    %v612 = vld [vmem:[%s609 + $0x10] sm:$0xff]
    %v613 = vld [vmem:[%s609 + $0x18] sm:$0xff]
    %v615 = vsel %vm145, %v607, 0
    %617 = vmatpush.msra.mxu0 0.0
    %618 = vmatpush.msra.mxu0 0.0
    %619 = vmatpush.msra.mxu0 0.0
    %620 = vmatpush.msra.mxu0 0.0
    %621 = vmatpush.msra.mxu0 0.0
    %622 = vmatpush.msra.mxu0 0.0
    %623 = vmatpush.msra.mxu0 0.0
    %624 = vmatpush.msra.mxu0 0.0
    %625 = vmatpush.msra.mxu0 0.0
    %626 = vmatpush.msra.mxu0 0.0
    %627 = vmatpush.msra.mxu0 0.0
    %628 = vmatpush.msra.mxu0 0.0
    %629 = vmatpush.msra.mxu0 %v613
    %630 = vmatpush.msra.mxu0 %v612
    %631 = vmatpush.msra.mxu0 %v611
    %632 = vmatpush.msra.mxu0 %v610
    %633 = vmatmul.f32.gmra.mxu0 %v615
    %v634 = vpop.f32.mrf.mxu0
    %v635 = vadd.f32 0.0, %v634
    %636 = vdwg.mxu0
    %v637 = vadd.f32 %v466, %v635
    %638 = vst [vmem:[#allocation14] sm:$0xff] %v637
    // Predicated region
    $region58: #{tpu_custom_call.1} parent=1 // pred_check
      _
    $region59: #{tpu_custom_call.1} parent=1 // pred_check_branch
      %640 = sbr.rel (0) target = $region61
    $region60: #{tpu_custom_call.1} parent=1 // pred_region
      %642 = vsyncadd [#allocation4], 0
      %s644 = sshll.u32 [#allocation14], 4
      %s645 = int_to_ptr.vmem [resolvable:$true] %s644
      %s646 = sshll.u32 %s7, 4
      %s647 = int_to_ptr.hbm [resolvable:$true] %s646
      %649 = dma.vmem_to_hbm [thread:$0]  %s645, 128, %s647, [#allocation4]
    $region61: #{tpu_custom_call.1} parent=1 // pred_fallthru
      _
    // Predicated region
    $region62: #{tpu_custom_call.1} parent=1 // pred_check
      _
    $region63: #{tpu_custom_call.1} parent=1 // pred_check_branch
      %651 = sbr.rel (0) target = $region65
    $region64: #{tpu_custom_call.1} parent=1 // pred_region
      %653 = dma.done [#allocation4], 128
    $region65: #{tpu_custom_call.1} parent=1 // pred_fallthru
      _
    %654 = vsyncpa [#allocation3], 1
    %655 = vsyncpa [#allocation6], 1
    %656 = vsyncpa [#allocation9], 1
    %657 = vsyncpa [#allocation12], 1
    %658 = vsyncpa [#allocation4], 1

</llo_original>
